<compile_context>
chip_gen: v7x
topology: tpu7x:2x2x1
jax: 0.10.0
libtpu: 0.0.40
codegen_flags: <defaults>
</compile_context>

<pallas_src>
import functools

import jax
import jax.numpy as jnp
from jax import lax
from jax.experimental import pallas as pl
from jax.experimental.pallas import tpu as pltpu


def _round_up(a: int, b: int) -> int:
    return (a + b - 1) // b * b


def _vmem_budget_bytes() -> int:
    """~85% of the physical per-core VMEM; falls back to the smallest (v7x) size."""
    cap = 64 << 20
    try:
        info = pltpu.get_tpu_info()
        c = int(getattr(info, "vmem_capacity_bytes", 0) or 0)
        if c > 0:
            cap = c
    except Exception:
        pass
    return int(cap * 0.85)


# -----------------------------------------------------------------------------
# Fused path: full-K rows per N tile, weight fake-quantized once per N tile.
# -----------------------------------------------------------------------------
def _fused_quant_linear_kernel(x_ref, w_ref, b_ref, o_ref, wdq_ref, *, bits):
    qmax = float(2 ** bits - 1)

    # Quantize/dequantize the (tn, K) weight tile only when a new N tile starts.
    # M is the inner grid axis, so the scratch (and the weight DMA, whose block
    # index is constant over m) is reused across all M tiles.
    @pl.when(pl.program_id(1) == 0)
    def _():
        w = w_ref[...].astype(jnp.float32)
        min_val = jnp.min(w, axis=-1, keepdims=True)           # (tn, 1)
        max_val = jnp.max(w, axis=-1, keepdims=True)           # (tn, 1)
        scale = (max_val - min_val) * (1.0 / qmax)             # (tn, 1)
        safe_scale = jnp.where(scale > 0.0, scale, 1.0)        # constant / padded rows
        inv_scale = pl.reciprocal(safe_scale, approx=False)    # exact: keeps round() faithful
        q = jnp.clip(jnp.round((w - min_val) * inv_scale), 0.0, qmax)
        wdq_ref[...] = (q * scale + min_val).astype(wdq_ref.dtype)

    # (tm, K) . (tn, K) contracting on K -> (tm, tn); x already in compute dtype.
    acc = lax.dot_general(
        x_ref[...], wdq_ref[...],
        dimension_numbers=(((1,), (1,)), ((), ())),
        preferred_element_type=jnp.float32)
    o_ref[...] = (acc + b_ref[...].astype(jnp.float32)).astype(o_ref.dtype)


def _fused_path(x_c, weight, bias, *, bits, tm, tn, out_dtype, compute_dtype, budget):
    M, K = x_c.shape
    N = weight.shape[0]
    Mp, Np = _round_up(M, tm), _round_up(N, tn)

    # Pad M / N only (never K here: zero-padding K would corrupt per-row min/max).
    x_p = x_c if Mp == M else jnp.pad(x_c, ((0, Mp - M), (0, 0)))
    w_p = weight if Np == N else jnp.pad(weight, ((0, Np - N), (0, 0)))
    b_p = bias if Np == N else jnp.pad(bias, (0, Np - N))
    b2d = b_p.reshape(1, Np).astype(jnp.float32)

    it_x = jnp.dtype(compute_dtype).itemsize
    grid = (Np // tn, Mp // tm)          # N outer (parallel), M inner (arbitrary)

    out = pl.pallas_call(
        functools.partial(_fused_quant_linear_kernel, bits=bits),
        out_shape=jax.ShapeDtypeStruct((Mp, Np), out_dtype),
        grid_spec=pltpu.PrefetchScalarGridSpec(
            num_scalar_prefetch=0,
            grid=grid,
            in_specs=[
                pl.BlockSpec((tm, K), lambda n, m: (m, 0)),    # activations (compute dtype)
                pl.BlockSpec((tn, K), lambda n, m: (n, 0)),    # weight f32 (constant over m)
                pl.BlockSpec((1, tn), lambda n, m: (0, n)),    # bias f32
            ],
            out_specs=pl.BlockSpec((tm, tn), lambda n, m: (m, n)),
            scratch_shapes=[pltpu.VMEM((tn, K), compute_dtype)],   # dequantized weight tile
        ),
        compiler_params=pltpu.CompilerParams(
            dimension_semantics=("parallel", "arbitrary"),
            vmem_limit_bytes=budget,
        ),
        cost_estimate=pl.CostEstimate(
            flops=2 * Mp * Np * K,
            transcendentals=0,
            # x is re-streamed once per N tile.
            bytes_accessed=(Mp * K * it_x * (Np // tn)
                            + Np * K * 4 + Np * 4
                            + Mp * Np * jnp.dtype(out_dtype).itemsize),
        ),
    )(x_p, w_p, b2d)

    if Mp != M or Np != N:
        out = out[:M, :N]
    return out


# -----------------------------------------------------------------------------
# Split path (large K / decode): pass 1 dequantizes W once to bf16 in HBM,
# pass 2 is a standard (n, m, k)-tiled matmul with an f32 accumulator.
# -----------------------------------------------------------------------------
def _dequant_rows_kernel(w_ref, wdq_ref, *, bits):
    qmax = float(2 ** bits - 1)
    w = w_ref[...].astype(jnp.float32)
    min_val = jnp.min(w, axis=-1, keepdims=True)
    max_val = jnp.max(w, axis=-1, keepdims=True)
    scale = (max_val - min_val) * (1.0 / qmax)
    safe_scale = jnp.where(scale > 0.0, scale, 1.0)
    inv_scale = pl.reciprocal(safe_scale, approx=False)
    q = jnp.clip(jnp.round((w - min_val) * inv_scale), 0.0, qmax)
    wdq_ref[...] = (q * scale + min_val).astype(wdq_ref.dtype)


def _matmul_bias_kernel(x_ref, w_ref, b_ref, o_ref, acc_ref):
    @pl.when(pl.program_id(2) == 0)
    def _():
        acc_ref[...] = jnp.zeros_like(acc_ref)

    acc_ref[...] += lax.dot_general(
        x_ref[...], w_ref[...],
        dimension_numbers=(((1,), (1,)), ((), ())),
        preferred_element_type=jnp.float32)

    @pl.when(pl.program_id(2) == pl.num_programs(2) - 1)
    def _():
        o_ref[...] = (acc_ref[...] + b_ref[...].astype(jnp.float32)).astype(o_ref.dtype)


def _split_path(x_c, weight, bias, *, bits, tm, tn, tk, out_dtype, compute_dtype, budget):
    M, K = x_c.shape
    N = weight.shape[0]

    tk = min(tk, _round_up(K, 128))
    tk = max(128, tk - tk % 128)
    Np, Mp, Kp = _round_up(N, tn), _round_up(M, tm), _round_up(K, tk)
    it = jnp.dtype(compute_dtype).itemsize

    # ---- pass 1: per-row dynamic fake-quant (streams W exactly once; K is
    #      NEVER padded here, so per-row min/max stays correct). ----
    tnq = 256 if (tn % 256 == 0 and 12 * 256 * K <= budget) else 128
    # TODO(synk): for extreme K (> ~40k) a K-tiled running-min/max pre-pass is
    # needed to bound this pass's VMEM as well.
    w_p = weight if Np == N else jnp.pad(weight, ((0, Np - N), (0, 0)))
    wdq = pl.pallas_call(
        functools.partial(_dequant_rows_kernel, bits=bits),
        out_shape=jax.ShapeDtypeStruct((Np, K), compute_dtype),
        grid_spec=pltpu.PrefetchScalarGridSpec(
            num_scalar_prefetch=0,
            grid=(Np // tnq,),
            in_specs=[pl.BlockSpec((tnq, K), lambda n: (n, 0))],
            out_specs=pl.BlockSpec((tnq, K), lambda n: (n, 0)),
        ),
        compiler_params=pltpu.CompilerParams(
            dimension_semantics=("parallel",),
            vmem_limit_bytes=budget,
        ),
        cost_estimate=pl.CostEstimate(
            flops=8 * Np * K, transcendentals=0,
            bytes_accessed=Np * K * (4 + it)),
    )(w_p)

    # ---- pass 2: K-tiled matmul + bias.  Zero-padding K is safe now (the
    #      dequant already happened on the true K). ----
    x_p = x_c
    if Mp != M or Kp != K:
        x_p = jnp.pad(x_c, ((0, Mp - M), (0, Kp - K)))
    if Kp != K:
        wdq = jnp.pad(wdq, ((0, 0), (0, Kp - K)))
    b_p = bias if Np == N else jnp.pad(bias, (0, Np - N))
    b2d = b_p.reshape(1, Np).astype(jnp.float32)

    out = pl.pallas_call(
        _matmul_bias_kernel,
        out_shape=jax.ShapeDtypeStruct((Mp, Np), out_dtype),
        grid_spec=pltpu.PrefetchScalarGridSpec(
            num_scalar_prefetch=0,
            grid=(Np // tn, Mp // tm, Kp // tk),     # reduction axis (k) innermost
            in_specs=[
                pl.BlockSpec((tm, tk), lambda n, m, k: (m, k)),   # x  (compute dtype)
                pl.BlockSpec((tn, tk), lambda n, m, k: (n, k)),   # w_dq (compute dtype)
                pl.BlockSpec((1, tn), lambda n, m, k: (0, n)),    # bias f32
            ],
            out_specs=pl.BlockSpec((tm, tn), lambda n, m, k: (m, n)),
            scratch_shapes=[pltpu.VMEM((tm, tn), jnp.float32)],   # f32 accumulator
        ),
        compiler_params=pltpu.CompilerParams(
            dimension_semantics=("parallel", "parallel", "arbitrary"),
            vmem_limit_bytes=budget,
        ),
        cost_estimate=pl.CostEstimate(
            flops=2 * Mp * Np * Kp,
            transcendentals=0,
            bytes_accessed=(Mp * Kp * it * (Np // tn)
                            + Np * Kp * it * (Mp // tm)
                            + Np * 4
                            + Mp * Np * jnp.dtype(out_dtype).itemsize)),
    )(x_p, wdq, b2d)

    if Mp != M or Np != N:
        out = out[:M, :N]
    return out


# -----------------------------------------------------------------------------
# Public entry point
# -----------------------------------------------------------------------------
def generative_quantized_linear(x, weight, bias, *, bits=8, tm=256, tn=512, tk=512,
                                compute_dtype=jnp.bfloat16, force_split=False):
    """y = x @ fake_quant(weight).T + bias  (dynamic per-row quantization).

    x:      (M, K) activations;  weight: (N, K);  bias: (N,).  Returns (M, N).
    Matmul runs in `compute_dtype` (bf16 by default; pass jnp.float32 for
    bit-faithful-to-PyTorch results at 2x MXU cost).
    """
    M, K = x.shape
    N, Kw = weight.shape
    assert K == Kw, "in_features mismatch"
    out_dtype = x.dtype
    cdt = jnp.dtype(compute_dtype)
    budget = _vmem_budget_bytes()

    # ---- tile-size selection: lane-dense (128-multiple) N tiles, megacore-aware ----
    n128 = _round_up(N, 128)
    tn = min(tn, n128)
    n_tiles_128 = n128 // 128
    if n_tiles_128 >= 2:                       # >= 2 N tiles so the "parallel"
        tn = min(tn, max(1, n_tiles_128 // 2) * 128)   # axis feeds both v7x cores
    tn = max(128, tn - tn % 128)
    tm = min(tm, _round_up(M, 8))

    def fused_vmem(tm_, tn_):
        return (2 * tm_ * K * cdt.itemsize      # x (double-buffered, compute dtype)
                + 2 * tn_ * K * 4               # weight f32
                + 2 * tn_ * 4                   # bias
                + 2 * tm_ * tn_ * 4             # output
                + tn_ * K * cdt.itemsize)       # dequantized-weight scratch

    tm_f, tn_f = tm, tn
    while fused_vmem(tm_f, tn_f) > budget and (tn_f > 128 or tm_f > 128):
        if tn_f >= tm_f and tn_f > 128:
            tn_f = max(128, tn_f // 2)
        elif tm_f > 128:
            tm_f = max(128, tm_f // 2)
        else:
            break
    use_split = force_split or (fused_vmem(tm_f, tn_f) > budget)

    # Cast activations to the compute dtype ONCE at the boundary (not per step).
    x_c = x if x.dtype == cdt else x.astype(cdt)

    if not use_split:
        return _fused_path(x_c, weight, bias, bits=bits, tm=tm_f, tn=tn_f,
                           out_dtype=out_dtype, compute_dtype=cdt, budget=budget)
    return _split_path(x_c, weight, bias, bits=bits, tm=tm, tn=tn, tk=tk,
                       out_dtype=out_dtype, compute_dtype=cdt, budget=budget)


def _reference(x, weight, bias, *, bits=8, compute_dtype=jnp.bfloat16):
    """Plain-JAX reference mirroring the PyTorch dynamic fake-quant semantics
    (matmul performed in the same compute dtype as the kernel)."""
    qmax = float(2 ** bits - 1)
    min_val = jnp.min(weight, axis=-1, keepdims=True)
    max_val = jnp.max(weight, axis=-1, keepdims=True)
    scale = (max_val - min_val) / qmax
    safe_scale = jnp.where(scale > 0.0, scale, 1.0)
    q = jnp.clip(jnp.round((weight - min_val) / safe_scale), 0.0, qmax)
    w_dq = q * scale + min_val
    y = jnp.dot(x.astype(compute_dtype), w_dq.astype(compute_dtype).T,
                preferred_element_type=jnp.float32)
    return y + bias[None, :]


if __name__ == "__main__":
    key = jax.random.PRNGKey(0)
    k_x, k_w, k_b, k_x2, k_w2, k_b2 = jax.random.split(key, 6)

    # --- case 1: small Linear, fused (full-K) path ---
    batch, seq, hidden_in, hidden_out = 2, 8, 32, 32
    x3d = jax.random.normal(k_x, (batch, seq, hidden_in), dtype=jnp.float32)
    weight = 0.1 * jax.random.normal(k_w, (hidden_out, hidden_in), dtype=jnp.float32)
    bias = 0.01 * jax.random.normal(k_b, (hidden_out,), dtype=jnp.float32)
    x2d = x3d.reshape(batch * seq, hidden_in)

    out = jax.block_until_ready(generative_quantized_linear(x2d, weight, bias, bits=8))
    ref = _reference(x2d, weight, bias, bits=8)
    assert out.shape == (batch * seq, hidden_out)
    md = float(jnp.max(jnp.abs(out - ref)))
    assert jnp.allclose(out, ref, atol=1e-2, rtol=1e-2), f"fused mismatch, max diff {md}"

    # --- case 2: force the K-tiled split path (dequant pre-pass + (n,m,k) matmul),
    #     with K not a multiple of tk to exercise the post-quant K padding ---
    M2, K2, N2 = 24, 320, 64
    x2 = jax.random.normal(k_x2, (M2, K2), dtype=jnp.float32)
    w2 = 0.1 * jax.random.normal(k_w2, (N2, K2), dtype=jnp.float32)
    b2 = 0.01 * jax.random.normal(k_b2, (N2,), dtype=jnp.float32)
    out2 = jax.block_until_ready(
        generative_quantized_linear(x2, w2, b2, bits=8, tk=128, force_split=True))
    ref2 = _reference(x2, w2, b2, bits=8)
    assert out2.shape == (M2, N2)
    md2 = float(jnp.max(jnp.abs(out2 - ref2)))
    assert jnp.allclose(out2, ref2, atol=1e-2, rtol=1e-2), f"split mismatch, max diff {md2}"

    # TODO(synk): static-mode path (per-parameter-name scale/zero ParameterDict
    # lookup over an arbitrary wrapped module) has no single-kernel equivalent;
    # only the dynamic-mode quantized Linear forward is implemented here.
    print("KERNEL_OK")
</pallas_src>

<mosaic_0001>
module attributes {stable_mosaic.version = 11 : i64} {
  func.func @_fused_quant_linear_kernel(%arg0: i32, %arg1: i32, %arg2: memref<16x32xbf16, #tpu.memory_space<vmem>>, %arg3: memref<128x32xf32, #tpu.memory_space<vmem>>, %arg4: memref<1x128xf32, #tpu.memory_space<vmem>>, %arg5: memref<16x128xf32, #tpu.memory_space<vmem>>, %arg6: memref<128x32xbf16, #tpu.memory_space<vmem>>) attributes {dimension_semantics = [#tpu.dimension_semantics<parallel>, #tpu.dimension_semantics<arbitrary>], iteration_bounds = array<i64: 1, 1>, scalar_prefetch = 0 : i64, scratch_operands = 1 : i64, tpu.core_type = #tpu.core_type<tc>, window_params = [{transform_indices = @transform_0, window_bounds = array<i64: 16, 32>}, {transform_indices = @transform_1, window_bounds = array<i64: 128, 32>}, {transform_indices = @transform_2, window_bounds = array<i64: 1, 128>}, {transform_indices = @transform_3, window_bounds = array<i64: 16, 128>}]} {
    %c0_i32 = arith.constant 0 : i32
    %0 = arith.cmpi eq, %arg1, %c0_i32 : i32
    %1 = arith.extui %0 : i1 to i32
    %c0_i32_0 = arith.constant 0 : i32
    %2 = arith.cmpi ne, %1, %c0_i32_0 : i32
    scf.if %2 {
      %c0_8 = arith.constant 0 : index
      %c0_9 = arith.constant 0 : index
      %10 = vector.load %arg3[%c0_8, %c0_9] : memref<128x32xf32, #tpu.memory_space<vmem>>, vector<128x32xf32>
      %cst_10 = arith.constant dense<0x7F800000> : vector<128xf32>
      %11 = vector.multi_reduction <minimumf>, %10, %cst_10 [1] : vector<128x32xf32> to vector<128xf32>
      %12 = vector.shape_cast %11 : vector<128xf32> to vector<128x1xf32>
      %cst_11 = arith.constant dense<0xFF800000> : vector<128xf32>
      %13 = vector.multi_reduction <maximumf>, %10, %cst_11 [1] : vector<128x32xf32> to vector<128xf32>
      %14 = vector.shape_cast %13 : vector<128xf32> to vector<128x1xf32>
      %15 = arith.subf %14, %12 : vector<128x1xf32>
      %cst_12 = arith.constant 0.00392156886 : f32
      %16 = vector.broadcast %cst_12 : f32 to vector<128x1xf32>
      %17 = arith.mulf %15, %16 : vector<128x1xf32>
      %cst_13 = arith.constant 0.000000e+00 : f32
      %18 = vector.broadcast %cst_13 : f32 to vector<128x1xf32>
      %19 = arith.cmpf ogt, %17, %18 : vector<128x1xf32>
      %cst_14 = arith.constant 1.000000e+00 : f32
      %20 = vector.broadcast %cst_14 : f32 to vector<128x1xf32>
      %21 = arith.select %19, %17, %20 : vector<128x1xi1>, vector<128x1xf32>
      %22 = tpu.reciprocal %21 : vector<128x1xf32> -> vector<128x1xf32>
      %23 = vector.broadcast %12 : vector<128x1xf32> to vector<128x32xf32>
      %24 = arith.subf %10, %23 : vector<128x32xf32>
      %25 = vector.broadcast %22 : vector<128x1xf32> to vector<128x32xf32>
      %26 = arith.mulf %24, %25 : vector<128x32xf32>
      %27 = math.roundeven %26 : vector<128x32xf32>
      %cst_15 = arith.constant 0.000000e+00 : f32
      %cst_16 = arith.constant 2.550000e+02 : f32
      %28 = vector.broadcast %cst_15 : f32 to vector<128x32xf32>
      %29 = arith.maximumf %28, %27 : vector<128x32xf32>
      %30 = vector.broadcast %cst_16 : f32 to vector<128x32xf32>
      %31 = arith.minimumf %30, %29 : vector<128x32xf32>
      %32 = vector.broadcast %17 : vector<128x1xf32> to vector<128x32xf32>
      %33 = arith.mulf %31, %32 : vector<128x32xf32>
      %34 = vector.broadcast %12 : vector<128x1xf32> to vector<128x32xf32>
      %35 = arith.addf %33, %34 : vector<128x32xf32>
      %36 = arith.truncf %35 : vector<128x32xf32> to vector<128x32xbf16>
      %c0_17 = arith.constant 0 : index
      %c0_18 = arith.constant 0 : index
      %37 = vector.load %arg6[%c0_17, %c0_18] : memref<128x32xbf16, #tpu.memory_space<vmem>>, vector<128x32xbf16>
      tpu.vector_store %arg6[%c0_17, %c0_18], %36 {strides = array<i32>} : memref<128x32xbf16, #tpu.memory_space<vmem>>, vector<128x32xbf16>,
    } else {
    }
    %c0 = arith.constant 0 : index
    %c0_1 = arith.constant 0 : index
    %3 = vector.load %arg2[%c0, %c0_1] : memref<16x32xbf16, #tpu.memory_space<vmem>>, vector<16x32xbf16>
    %c0_2 = arith.constant 0 : index
    %c0_3 = arith.constant 0 : index
    %4 = vector.load %arg6[%c0_2, %c0_3] : memref<128x32xbf16, #tpu.memory_space<vmem>>, vector<128x32xbf16>
    %cst = arith.constant dense<0.000000e+00> : vector<16x128xf32>
    %5 = tpu.matmul %3, %4, %cst {dimension_numbers = #tpu.dot_dimension_numbers<[1], [1], [0], [0], [0, 0, 1, 0], [], []>} : vector<16x32xbf16>, vector<128x32xbf16>, vector<16x128xf32> -> vector<16x128xf32>
    %c0_4 = arith.constant 0 : index
    %c0_5 = arith.constant 0 : index
    %6 = vector.load %arg4[%c0_4, %c0_5] : memref<1x128xf32, #tpu.memory_space<vmem>>, vector<1x128xf32>
    %7 = vector.broadcast %6 : vector<1x128xf32> to vector<16x128xf32>
    %8 = arith.addf %5, %7 : vector<16x128xf32>
    %c0_6 = arith.constant 0 : index
    %c0_7 = arith.constant 0 : index
    %9 = vector.load %arg5[%c0_6, %c0_7] : memref<16x128xf32, #tpu.memory_space<vmem>>, vector<16x128xf32>
    tpu.vector_store %arg5[%c0_6, %c0_7], %8 {strides = array<i32>} : memref<16x128xf32, #tpu.memory_space<vmem>>, vector<16x128xf32>,
    return
  }
  func.func @transform_0(%arg0: i32, %arg1: i32) -> (i32, i32) {
    %c0_i32 = arith.constant 0 : i32
    %c0_i32_0 = arith.constant 0 : i32
    return %arg1, %c0_i32 : i32, i32
  }
  func.func @transform_1(%arg0: i32, %arg1: i32) -> (i32, i32) {
    %c0_i32 = arith.constant 0 : i32
    %c0_i32_0 = arith.constant 0 : i32
    return %arg0, %c0_i32 : i32, i32
  }
  func.func @transform_2(%arg0: i32, %arg1: i32) -> (i32, i32) {
    %c0_i32 = arith.constant 0 : i32
    %c0_i32_0 = arith.constant 0 : i32
    return %c0_i32, %arg0 : i32, i32
  }
  func.func @transform_3(%arg0: i32, %arg1: i32) -> (i32, i32) {
    %c0_i32 = arith.constant 0 : i32
    return %arg1, %arg0 : i32, i32
  }
}

</mosaic_0001>

<llo_original>
// kernel: tpu_custom_call.1
$region0: #{tpu_custom_call.1}
  #allocation0 [shape = 'u32[]', space=smem, size = 0x4, offset = 0x4, fixed_abs, tag = 'smem constant byte address 0x4 - core index']
  #allocation1 [shape = 'u32[144,128]{1,0:T(1,128)}', space=vmem, size = 0x12000, scoped, tag = 'internal scratch']
  #allocation2 [shape = 'bf16[128,32]{1,0:T(16,128)(2,1)}', space=vmem, size = 0x8000, scoped, tag = 'scratch operand']
  %s0 = inlined_call_operand.vmem [shape: bf16[16,32], index: 0, kind: input, shape index: {}]
  %s1 = inlined_call_operand.vmem [shape: f32[128,32], index: 1, kind: input, shape index: {}]
  %s2 = inlined_call_operand.vmem [shape: f32[1,128], index: 2, kind: input, shape index: {}]
  %s3 = inlined_call_operand.hbm [shape: f32[16,128], index: 3, kind: output, shape index: {}]
  %s4 = sld [smem:[#allocation0]]
  $region26: #{tpu_custom_call.1} parent=0
    _
  %s6 = ssub.s32 1, %s4
  %s7 = scalar_select 0, %s6, %s4
  $region1: #{tpu_custom_call.1} parent=0
    #allocation3 [shape = 'u8[8192]{0}', space=vmem, size = 0x2000, scoped, tag = 'output window, operand 0, single buffered']
    #allocation4 [shape = 's32[1]{0}', space=sflag, size = 0x4, scoped, tag = 'scoped memory for tpu_custom_call.1']
    %8 = vsyncpa [#allocation4], 0
    // Predicated region
    $region2: #{tpu_custom_call.1} parent=1 // pred_check
      _
    $region3: #{tpu_custom_call.1} parent=1 // pred_check_branch
      %10 = sbr.rel (0) target = $region5
    $region4: #{tpu_custom_call.1} parent=1 // pred_region
      _
    $region5: #{tpu_custom_call.1} parent=1 // pred_fallthru
      _
    // Predicated region
    $region6: #{tpu_custom_call.1} parent=1 // pred_check
      _
    $region7: #{tpu_custom_call.1} parent=1 // pred_check_branch
      %12 = sbr.rel (0) target = $region9
    $region8: #{tpu_custom_call.1} parent=1 // pred_region
      _
    $region9: #{tpu_custom_call.1} parent=1 // pred_fallthru
      _
    // Predicated region
    $region10: #{tpu_custom_call.1} parent=1 // pred_check
      _
    $region11: #{tpu_custom_call.1} parent=1 // pred_check_branch
      %14 = sbr.rel (0) target = $region13
    $region12: #{tpu_custom_call.1} parent=1 // pred_region
      _
    $region13: #{tpu_custom_call.1} parent=1 // pred_fallthru
      _
    %p16 = scmp.eq.s32.totalorder 0, 0
    // Predicated region
    $region14: #{tpu_custom_call.1} parent=1 // pred_check
      %p17 = pneg %p16
    $region15: #{tpu_custom_call.1} parent=1 // pred_check_branch
      %19 = sbr.rel (%p17) target = $region17
    $region16: #{tpu_custom_call.1} parent=1 // pred_region
      %v20 = vld [vmem:[%s1] sm:$0xff]
      %v21 = vld [vmem:[%s1 + $0x8] sm:$0xff]
      %v22 = vld [vmem:[%s1 + $0x10] sm:$0xff]
      %v23 = vld [vmem:[%s1 + $0x18] sm:$0xff]
      %v24 = vld [vmem:[%s1 + $0x20] sm:$0xff]
      %v25 = vld [vmem:[%s1 + $0x28] sm:$0xff]
      %v26 = vld [vmem:[%s1 + $0x30] sm:$0xff]
      %v27 = vld [vmem:[%s1 + $0x38] sm:$0xff]
      %v28 = vld [vmem:[%s1 + $0x40] sm:$0xff]
      %v29 = vld [vmem:[%s1 + $0x48] sm:$0xff]
      %v30 = vld [vmem:[%s1 + $0x50] sm:$0xff]
      %v31 = vld [vmem:[%s1 + $0x58] sm:$0xff]
      %v32 = vld [vmem:[%s1 + $0x60] sm:$0xff]
      %v33 = vld [vmem:[%s1 + $0x68] sm:$0xff]
      %v34 = vld [vmem:[%s1 + $0x70] sm:$0xff]
      %v35 = vld [vmem:[%s1 + $0x78] sm:$0xff]
      %vm36 = vcmask 261120
      %v37 = vsel %vm36, %v20, inf
      %38 = vmin.xlane.f32.xlu0 %v37
      %v39 = vpop.xlane.xlu0 %38
      %v40 = vsel %vm36, %v21, inf
      %41 = vmin.xlane.f32.xlu0 %v40
      %v42 = vpop.xlane.xlu0 %41
      %v43 = vsel %vm36, %v22, inf
      %44 = vmin.xlane.f32.xlu0 %v43
      %v45 = vpop.xlane.xlu0 %44
      %v46 = vsel %vm36, %v23, inf
      %47 = vmin.xlane.f32.xlu0 %v46
      %v48 = vpop.xlane.xlu0 %47
      %v49 = vsel %vm36, %v24, inf
      %50 = vmin.xlane.f32.xlu0 %v49
      %v51 = vpop.xlane.xlu0 %50
      %v52 = vsel %vm36, %v25, inf
      %53 = vmin.xlane.f32.xlu0 %v52
      %v54 = vpop.xlane.xlu0 %53
      %v55 = vsel %vm36, %v26, inf
      %56 = vmin.xlane.f32.xlu0 %v55
      %v57 = vpop.xlane.xlu0 %56
      %v58 = vsel %vm36, %v27, inf
      %59 = vmin.xlane.f32.xlu0 %v58
      %v60 = vpop.xlane.xlu0 %59
      %v61 = vsel %vm36, %v28, inf
      %62 = vmin.xlane.f32.xlu0 %v61
      %v63 = vpop.xlane.xlu0 %62
      %v64 = vsel %vm36, %v29, inf
      %65 = vmin.xlane.f32.xlu0 %v64
      %v66 = vpop.xlane.xlu0 %65
      %v67 = vsel %vm36, %v30, inf
      %68 = vmin.xlane.f32.xlu0 %v67
      %v69 = vpop.xlane.xlu0 %68
      %v70 = vsel %vm36, %v31, inf
      %71 = vmin.xlane.f32.xlu0 %v70
      %v72 = vpop.xlane.xlu0 %71
      %v73 = vsel %vm36, %v32, inf
      %74 = vmin.xlane.f32.xlu0 %v73
      %v75 = vpop.xlane.xlu0 %74
      %v76 = vsel %vm36, %v33, inf
      %77 = vmin.xlane.f32.xlu0 %v76
      %v78 = vpop.xlane.xlu0 %77
      %v79 = vsel %vm36, %v34, inf
      %80 = vmin.xlane.f32.xlu0 %v79
      %v81 = vpop.xlane.xlu0 %80
      %v82 = vsel %vm36, %v35, inf
      %83 = vmin.xlane.f32.xlu0 %v82
      %v84 = vpop.xlane.xlu0 %83
      %v85 = vsel %vm36, %v20, -inf
      %86 = vmax.xlane.f32.xlu0 %v85
      %v87 = vpop.xlane.xlu0 %86
      %v88 = vsel %vm36, %v21, -inf
      %89 = vmax.xlane.f32.xlu0 %v88
      %v90 = vpop.xlane.xlu0 %89
      %v91 = vsel %vm36, %v22, -inf
      %92 = vmax.xlane.f32.xlu0 %v91
      %v93 = vpop.xlane.xlu0 %92
      %v94 = vsel %vm36, %v23, -inf
      %95 = vmax.xlane.f32.xlu0 %v94
      %v96 = vpop.xlane.xlu0 %95
      %v97 = vsel %vm36, %v24, -inf
      %98 = vmax.xlane.f32.xlu0 %v97
      %v99 = vpop.xlane.xlu0 %98
      %v100 = vsel %vm36, %v25, -inf
      %101 = vmax.xlane.f32.xlu0 %v100
      %v102 = vpop.xlane.xlu0 %101
      %v103 = vsel %vm36, %v26, -inf
      %104 = vmax.xlane.f32.xlu0 %v103
      %v105 = vpop.xlane.xlu0 %104
      %v106 = vsel %vm36, %v27, -inf
      %107 = vmax.xlane.f32.xlu0 %v106
      %v108 = vpop.xlane.xlu0 %107
      %v109 = vsel %vm36, %v28, -inf
      %110 = vmax.xlane.f32.xlu0 %v109
      %v111 = vpop.xlane.xlu0 %110
      %v112 = vsel %vm36, %v29, -inf
      %113 = vmax.xlane.f32.xlu0 %v112
      %v114 = vpop.xlane.xlu0 %113
      %v115 = vsel %vm36, %v30, -inf
      %116 = vmax.xlane.f32.xlu0 %v115
      %v117 = vpop.xlane.xlu0 %116
      %v118 = vsel %vm36, %v31, -inf
      %119 = vmax.xlane.f32.xlu0 %v118
      %v120 = vpop.xlane.xlu0 %119
      %v121 = vsel %vm36, %v32, -inf
      %122 = vmax.xlane.f32.xlu0 %v121
      %v123 = vpop.xlane.xlu0 %122
      %v124 = vsel %vm36, %v33, -inf
      %125 = vmax.xlane.f32.xlu0 %v124
      %v126 = vpop.xlane.xlu0 %125
      %v127 = vsel %vm36, %v34, -inf
      %128 = vmax.xlane.f32.xlu0 %v127
      %v129 = vpop.xlane.xlu0 %128
      %v130 = vsel %vm36, %v35, -inf
      %131 = vmax.xlane.f32.xlu0 %v130
      %v132 = vpop.xlane.xlu0 %131
      %v133 = vsub.f32 %v87, %v39
      %v134 = vsub.f32 %v90, %v42
      %v135 = vsub.f32 %v93, %v45
      %v136 = vsub.f32 %v96, %v48
      %v137 = vsub.f32 %v99, %v51
      %v138 = vsub.f32 %v102, %v54
      %v139 = vsub.f32 %v105, %v57
      %v140 = vsub.f32 %v108, %v60
      %v141 = vsub.f32 %v111, %v63
      %v142 = vsub.f32 %v114, %v66
      %v143 = vsub.f32 %v117, %v69
      %v144 = vsub.f32 %v120, %v72
      %v145 = vsub.f32 %v123, %v75
      %v146 = vsub.f32 %v126, %v78
      %v147 = vsub.f32 %v129, %v81
      %v148 = vsub.f32 %v132, %v84
      %v149 = vmul.f32 %v133, 0.003921569
      %v150 = vmul.f32 %v134, 0.003921569
      %v151 = vmul.f32 %v135, 0.003921569
      %v152 = vmul.f32 %v136, 0.003921569
      %v153 = vmul.f32 %v137, 0.003921569
      %v154 = vmul.f32 %v138, 0.003921569
      %v155 = vmul.f32 %v139, 0.003921569
      %v156 = vmul.f32 %v140, 0.003921569
      %v157 = vmul.f32 %v141, 0.003921569
      %v158 = vmul.f32 %v142, 0.003921569
      %v159 = vmul.f32 %v143, 0.003921569
      %v160 = vmul.f32 %v144, 0.003921569
      %v161 = vmul.f32 %v145, 0.003921569
      %v162 = vmul.f32 %v146, 0.003921569
      %v163 = vmul.f32 %v147, 0.003921569
      %v164 = vmul.f32 %v148, 0.003921569
      %vm165 = vcmp.gt.f32.partialorder %v149, 0.0
      %vm166 = vcmp.gt.f32.partialorder %v150, 0.0
      %vm167 = vcmp.gt.f32.partialorder %v151, 0.0
      %vm168 = vcmp.gt.f32.partialorder %v152, 0.0
      %vm169 = vcmp.gt.f32.partialorder %v153, 0.0
      %vm170 = vcmp.gt.f32.partialorder %v154, 0.0
      %vm171 = vcmp.gt.f32.partialorder %v155, 0.0
      %vm172 = vcmp.gt.f32.partialorder %v156, 0.0
      %vm173 = vcmp.gt.f32.partialorder %v157, 0.0
      %vm174 = vcmp.gt.f32.partialorder %v158, 0.0
      %vm175 = vcmp.gt.f32.partialorder %v159, 0.0
      %vm176 = vcmp.gt.f32.partialorder %v160, 0.0
      %vm177 = vcmp.gt.f32.partialorder %v161, 0.0
      %vm178 = vcmp.gt.f32.partialorder %v162, 0.0
      %vm179 = vcmp.gt.f32.partialorder %v163, 0.0
      %vm180 = vcmp.gt.f32.partialorder %v164, 0.0
      %v181 = vsel %vm165, %v149, 1.0
      %v182 = vsel %vm166, %v150, 1.0
      %v183 = vsel %vm167, %v151, 1.0
      %v184 = vsel %vm168, %v152, 1.0
      %v185 = vsel %vm169, %v153, 1.0
      %v186 = vsel %vm170, %v154, 1.0
      %v187 = vsel %vm171, %v155, 1.0
      %v188 = vsel %vm172, %v156, 1.0
      %v189 = vsel %vm173, %v157, 1.0
      %v190 = vsel %vm174, %v158, 1.0
      %v191 = vsel %vm175, %v159, 1.0
      %v192 = vsel %vm176, %v160, 1.0
      %v193 = vsel %vm177, %v161, 1.0
      %v194 = vsel %vm178, %v162, 1.0
      %v195 = vsel %vm179, %v163, 1.0
      %v196 = vsel %vm180, %v164, 1.0
      %v197 = vrcp.pop %v181
      %v198 = vrcp.pop %v182
      %v199 = vrcp.pop %v183
      %v200 = vrcp.pop %v184
      %v201 = vrcp.pop %v185
      %v202 = vrcp.pop %v186
      %v203 = vrcp.pop %v187
      %v204 = vrcp.pop %v188
      %v205 = vrcp.pop %v189
      %v206 = vrcp.pop %v190
      %v207 = vrcp.pop %v191
      %v208 = vrcp.pop %v192
      %v209 = vrcp.pop %v193
      %v210 = vrcp.pop %v194
      %v211 = vrcp.pop %v195
      %v212 = vrcp.pop %v196
      %v213 = vsub.f32 %v20, %v39
      %v214 = vsub.f32 %v21, %v42
      %v215 = vsub.f32 %v22, %v45
      %v216 = vsub.f32 %v23, %v48
      %v217 = vsub.f32 %v24, %v51
      %v218 = vsub.f32 %v25, %v54
      %v219 = vsub.f32 %v26, %v57
      %v220 = vsub.f32 %v27, %v60
      %v221 = vsub.f32 %v28, %v63
      %v222 = vsub.f32 %v29, %v66
      %v223 = vsub.f32 %v30, %v69
      %v224 = vsub.f32 %v31, %v72
      %v225 = vsub.f32 %v32, %v75
      %v226 = vsub.f32 %v33, %v78
      %v227 = vsub.f32 %v34, %v81
      %v228 = vsub.f32 %v35, %v84
      %v229 = vmul.f32 %v213, %v197
      %v230 = vmul.f32 %v214, %v198
      %v231 = vmul.f32 %v215, %v199
      %v232 = vmul.f32 %v216, %v200
      %v233 = vmul.f32 %v217, %v201
      %v234 = vmul.f32 %v218, %v202
      %v235 = vmul.f32 %v219, %v203
      %v236 = vmul.f32 %v220, %v204
      %v237 = vmul.f32 %v221, %v205
      %v238 = vmul.f32 %v222, %v206
      %v239 = vmul.f32 %v223, %v207
      %v240 = vmul.f32 %v224, %v208
      %v241 = vmul.f32 %v225, %v209
      %v242 = vmul.f32 %v226, %v210
      %v243 = vmul.f32 %v227, %v211
      %v244 = vmul.f32 %v228, %v212
      %v245 = vround.ne.pseudo %v229
      %v246 = vround.ne.pseudo %v230
      %v247 = vround.ne.pseudo %v231
      %v248 = vround.ne.pseudo %v232
      %v249 = vround.ne.pseudo %v233
      %v250 = vround.ne.pseudo %v234
      %v251 = vround.ne.pseudo %v235
      %v252 = vround.ne.pseudo %v236
      %v253 = vround.ne.pseudo %v237
      %v254 = vround.ne.pseudo %v238
      %v255 = vround.ne.pseudo %v239
      %v256 = vround.ne.pseudo %v240
      %v257 = vround.ne.pseudo %v241
      %v258 = vround.ne.pseudo %v242
      %v259 = vround.ne.pseudo %v243
      %v260 = vround.ne.pseudo %v244
      %v261 = vmax.f32 %v245, 0.0
      %v262 = vmax.f32 %v246, 0.0
      %v263 = vmax.f32 %v247, 0.0
      %v264 = vmax.f32 %v248, 0.0
      %v265 = vmax.f32 %v249, 0.0
      %v266 = vmax.f32 %v250, 0.0
      %v267 = vmax.f32 %v251, 0.0
      %v268 = vmax.f32 %v252, 0.0
      %v269 = vmax.f32 %v253, 0.0
      %v270 = vmax.f32 %v254, 0.0
      %v271 = vmax.f32 %v255, 0.0
      %v272 = vmax.f32 %v256, 0.0
      %v273 = vmax.f32 %v257, 0.0
      %v274 = vmax.f32 %v258, 0.0
      %v275 = vmax.f32 %v259, 0.0
      %v276 = vmax.f32 %v260, 0.0
      %v277 = vmin.f32 %v261, 255.0
      %v278 = vmin.f32 %v262, 255.0
      %v279 = vmin.f32 %v263, 255.0
      %v280 = vmin.f32 %v264, 255.0
      %v281 = vmin.f32 %v265, 255.0
      %v282 = vmin.f32 %v266, 255.0
      %v283 = vmin.f32 %v267, 255.0
      %v284 = vmin.f32 %v268, 255.0
      %v285 = vmin.f32 %v269, 255.0
      %v286 = vmin.f32 %v270, 255.0
      %v287 = vmin.f32 %v271, 255.0
      %v288 = vmin.f32 %v272, 255.0
      %v289 = vmin.f32 %v273, 255.0
      %v290 = vmin.f32 %v274, 255.0
      %v291 = vmin.f32 %v275, 255.0
      %v292 = vmin.f32 %v276, 255.0
      %v293 = vmul.f32 %v277, %v149
      %v294 = vmul.f32 %v278, %v150
      %v295 = vmul.f32 %v279, %v151
      %v296 = vmul.f32 %v280, %v152
      %v297 = vmul.f32 %v281, %v153
      %v298 = vmul.f32 %v282, %v154
      %v299 = vmul.f32 %v283, %v155
      %v300 = vmul.f32 %v284, %v156
      %v301 = vmul.f32 %v285, %v157
      %v302 = vmul.f32 %v286, %v158
      %v303 = vmul.f32 %v287, %v159
      %v304 = vmul.f32 %v288, %v160
      %v305 = vmul.f32 %v289, %v161
      %v306 = vmul.f32 %v290, %v162
      %v307 = vmul.f32 %v291, %v163
      %v308 = vmul.f32 %v292, %v164
      %v309 = vadd.f32 %v293, %v39
      %v310 = vadd.f32 %v294, %v42
      %v311 = vadd.f32 %v295, %v45
      %v312 = vadd.f32 %v296, %v48
      %v313 = vadd.f32 %v297, %v51
      %v314 = vadd.f32 %v298, %v54
      %v315 = vadd.f32 %v299, %v57
      %v316 = vadd.f32 %v300, %v60
      %v317 = vadd.f32 %v301, %v63
      %v318 = vadd.f32 %v302, %v66
      %v319 = vadd.f32 %v303, %v69
      %v320 = vadd.f32 %v304, %v72
      %v321 = vadd.f32 %v305, %v75
      %v322 = vadd.f32 %v306, %v78
      %v323 = vadd.f32 %v307, %v81
      %v324 = vadd.f32 %v308, %v84
      %v325 = vpack.c.bf16 %v310, %v309
      %v326 = vpack.c.bf16 %v312, %v311
      %v327 = vpack.c.bf16 %v314, %v313
      %v328 = vpack.c.bf16 %v316, %v315
      %v329 = vpack.c.bf16 %v318, %v317
      %v330 = vpack.c.bf16 %v320, %v319
      %v331 = vpack.c.bf16 %v322, %v321
      %v332 = vpack.c.bf16 %v324, %v323
      %333 = vst.msk [vmem:[#allocation2] sm:$0xff] %vm36, %v325
      %334 = vst.msk [vmem:[#allocation2 + $0x8] sm:$0xff] %vm36, %v326
      %335 = vst.msk [vmem:[#allocation2 + $0x10] sm:$0xff] %vm36, %v327
      %336 = vst.msk [vmem:[#allocation2 + $0x18] sm:$0xff] %vm36, %v328
      %337 = vst.msk [vmem:[#allocation2 + $0x20] sm:$0xff] %vm36, %v329
      %338 = vst.msk [vmem:[#allocation2 + $0x28] sm:$0xff] %vm36, %v330
      %339 = vst.msk [vmem:[#allocation2 + $0x30] sm:$0xff] %vm36, %v331
      %340 = vst.msk [vmem:[#allocation2 + $0x38] sm:$0xff] %vm36, %v332
    $region17: #{tpu_custom_call.1} parent=1 // pred_fallthru
      _
    %v341 = vld [vmem:[%s0] sm:$0xf]
    %v342 = vld [vmem:[%s0 + $0x4] sm:$0xf]
    %v343 = vld [vmem:[#allocation2] sm:$0xff]
    %v344 = vld [vmem:[#allocation2 + $0x8] sm:$0xff]
    %v345 = vld [vmem:[#allocation2 + $0x10] sm:$0xff]
    %v346 = vld [vmem:[#allocation2 + $0x18] sm:$0xff]
    %v347 = vld [vmem:[#allocation2 + $0x20] sm:$0xff]
    %v348 = vld [vmem:[#allocation2 + $0x28] sm:$0xff]
    %v349 = vld [vmem:[#allocation2 + $0x30] sm:$0xff]
    %v350 = vld [vmem:[#allocation2 + $0x38] sm:$0xff]
    %v351 = vld [vmem:[%s2] sm:$0x1]
    %v353 = vlaneseq
    %v354 = vshrl.u32 %v353, 7
    %v355 = vsub.s32 0, %v354
    %v356 = vrot.slane %v351, %v355
    %v360 = vunpack.c.l.b16 %v341
    %v361 = vunpack.c.l.b16 %v342
    %v362 = vpack.c.b16 %v361, %v360
    %vm363 = vcmask 261120
    %v365 = vsel %vm363, %v362, 0
    %v368 = vsel %vm363, %v343, 0
    %v371 = vsel %vm363, %v344, 0
    %v374 = vsel %vm363, %v345, 0
    %v377 = vsel %vm363, %v346, 0
    %v380 = vsel %vm363, %v347, 0
    %v383 = vsel %vm363, %v348, 0
    %v386 = vsel %vm363, %v349, 0
    %v389 = vsel %vm363, %v350, 0
    %391 = vmatprep.subr.bf16.mxu0 0
    %392 = vmatpush1.bf16.xpose.msra.mxu0 %v368
    %393 = vmatprep.subr.bf16.mxu0 0
    %394 = vmatpush1.bf16.xpose.msra.mxu0 %v371
    %395 = vmatprep.subr.bf16.mxu0 0
    %396 = vmatpush1.bf16.xpose.msra.mxu0 %v374
    %397 = vmatprep.subr.bf16.mxu0 0
    %398 = vmatpush1.bf16.xpose.msra.mxu0 %v377
    %399 = vmatprep.subr.bf16.mxu0 0
    %400 = vmatpush1.bf16.xpose.msra.mxu0 %v380
    %401 = vmatprep.subr.bf16.mxu0 0
    %402 = vmatpush1.bf16.xpose.msra.mxu0 %v383
    %403 = vmatprep.subr.bf16.mxu0 0
    %404 = vmatpush1.bf16.xpose.msra.mxu0 %v386
    %405 = vmatprep.subr.bf16.mxu0 0
    %406 = vmatpush1.bf16.xpose.msra.mxu0 %v389
    %407 = vmatprep.subr.bf16.mxu0 0
    %408 = vmatpush1.bf16.xpose.msra.mxu0 0
    %409 = vmatprep.subr.bf16.mxu0 0
    %410 = vmatpush1.bf16.xpose.msra.mxu0 0
    %411 = vmatprep.subr.bf16.mxu0 0
    %412 = vmatpush1.bf16.xpose.msra.mxu0 0
    %413 = vmatprep.subr.bf16.mxu0 0
    %414 = vmatpush1.bf16.xpose.msra.mxu0 0
    %415 = vmatprep.subr.bf16.mxu0 0
    %416 = vmatpush1.bf16.xpose.msra.mxu0 0
    %417 = vmatprep.subr.bf16.mxu0 0
    %418 = vmatpush1.bf16.xpose.msra.mxu0 0
    %419 = vmatprep.subr.bf16.mxu0 0
    %420 = vmatpush1.bf16.xpose.msra.mxu0 0
    %421 = vmatprep.subr.bf16.mxu0 0
    %422 = vmatpush1.bf16.xpose.msra.mxu0 0
    %423 = vmatprep.mubr.bf16.mxu0 0
    %424 = vmatmul.mubr.bf16.gmra.mrb[0].mxu0 %v365
    %v425 = vpop.f32.mrb[0].mxu0
    %v426 = vadd.f32 %v356, %v425
    %v427 = vpop.f32.mrb[0].mxu0
    %v428 = vpop.f32.mrb[0].mxu0
    %v429 = vadd.f32 %v356, %v428
    %v430 = vpop.f32.mrb[0].mxu0
    %431 = vdwg.mxu0
    %432 = vst [vmem:[#allocation3] sm:$0xff] %v426
    %433 = vst [vmem:[#allocation3 + $0x8] sm:$0xff] %v429
    // Predicated region
    $region18: #{tpu_custom_call.1} parent=1 // pred_check
      _
    $region19: #{tpu_custom_call.1} parent=1 // pred_check_branch
      %435 = sbr.rel (0) target = $region21
    $region20: #{tpu_custom_call.1} parent=1 // pred_region
      %s437 = ssub.s32 256, 256
      %438 = vsyncadd [#allocation4], %s437
      %s439 = sshll.u32 [#allocation3], 4
      %s440 = int_to_ptr.vmem [resolvable:$true] %s439
      %445 = dma.vmem_to_hbm [thread:$0]  %s440, 256, %s3, [#allocation4], 128, 128, 8
    $region21: #{tpu_custom_call.1} parent=1 // pred_fallthru
      _
    // Predicated region
    $region22: #{tpu_custom_call.1} parent=1 // pred_check
      _
    $region23: #{tpu_custom_call.1} parent=1 // pred_check_branch
      %447 = sbr.rel (0) target = $region25
    $region24: #{tpu_custom_call.1} parent=1 // pred_region
      %448 = dma.done [#allocation4], 256
    $region25: #{tpu_custom_call.1} parent=1 // pred_fallthru
      _
    %449 = vsyncpa [#allocation4], 1

</llo_original>
